<compile_context>
chip_gen: v5e
topology: v5e:2x2
jax: 0.10.0
libtpu: 0.0.40
codegen_flags: <defaults>
</compile_context>

<pallas_src>
import functools

import jax
import jax.numpy as jnp
from jax.experimental import pallas as pl
from jax.experimental.pallas import tpu as pltpu

_BN_EPS = 1e-5          # PyTorch BatchNorm1d default eps
_L2_EPS = 1e-8          # l2norm eps from the module


def _cdiv(a, b):
    return (a + b - 1) // b


def _round_up(x, m):
    return (x + m - 1) // m * m


def _pick_tile_rows(elems_per_row, budget, bytes_per_elem=4):
    t = budget // (elems_per_row * bytes_per_elem)
    return max(8, (t // 8) * 8)


def _hw_budgets():
    """(per-buffer tile budget, vmem_limit_bytes, cap tiles for multi-core)."""
    kind = ""
    try:
        kind = jax.devices()[0].device_kind.lower()
    except Exception:
        pass
    big_vmem_single_core = ("v6" in kind) or ("v5e" in kind) or ("v5 lite" in kind) \
        or ("v5litepod" in kind)
    if big_vmem_single_core:
        return 12 * 1024 * 1024, 100 * 1024 * 1024, False
    # Conservative default: fits v7x's 64 MiB/core VMEM; assume >=2 TensorCores per chip.
    return 4 * 1024 * 1024, 48 * 1024 * 1024, True


# ---------------- kernel 1: per-image query (mean -> fused Linear_{g,b} -> fold eval BN) ----


def _img_query_kernel(img_ref, w_ref, b_ref, bn_m_ref, bn_v_ref,
                      scale_ref, offset_ref, imgv_ref, *, d):
    img = img_ref[...].astype(jnp.float32)                         # (TB, R, D)
    img_mean = jnp.mean(img, axis=1)                               # (TB, D)

    # One fused (TB,D) x (D,2D) matmul for fc_gamma and fc_beta.
    x = img_mean.astype(w_ref.dtype)
    gb = jnp.dot(x, w_ref[...], preferred_element_type=jnp.float32) + b_ref[...]
    gam = gb[:, :d]                                                # (TB, D)
    bet = gb[:, d:]                                                # (TB, D)

    # Fold eval-mode BatchNorm (running stats, affine=False) into the ADAPT affine:
    #   (cap - mean)/sqrt(var+eps) * (1+gamma) + beta  ==  cap*scale + offset
    inv_std = jax.lax.rsqrt(bn_v_ref[...] + _BN_EPS)               # (1, D)
    scale = inv_std * (1.0 + gam)                                  # (TB, D)
    scale_ref[...] = scale.astype(scale_ref.dtype)
    offset_ref[...] = (bet - bn_m_ref[...] * scale).astype(offset_ref.dtype)

    # l2-normalized image vector (cold path -> exact divide keeps it bit-faithful).
    nrm = jnp.sqrt(jnp.sum(img_mean * img_mean, axis=-1, keepdims=True)) + _L2_EPS
    imgv_ref[...] = (img_mean / nrm).astype(imgv_ref.dtype)


# ---------------- kernel 2: fused ADAPT + Fovea + max-pool + l2norm + cosine sim ------------


def _adapt_fovea_sim_kernel(cap_ref, scale_ref, offset_ref, imgv_ref, o_ref,
                            *, smooth, n_img):
    # Caption tile (TC, T, D) stays resident in VMEM for the whole image sweep; per-image
    # vectors are fully resident.  One grid step per caption tile.
    def per_image(i, carry):
        cap = cap_ref[...]                                          # (TC, T, D) f32
        sc = scale_ref[pl.ds(i, 1), :][:, None, :]                  # (1, 1, D)
        off = offset_ref[pl.ds(i, 1), :][:, None, :]                # (1, 1, D)

        # ADAPT (eval BatchNorm already folded into scale/offset).
        adapted = cap * sc + off                                    # (TC, T, D)

        # Fovea: softmax over timesteps (axis=1), gate the adapted features.
        # smooth is a static Python float -> skip the multiply in the common smooth==1 case.
        logits = adapted if smooth == 1.0 else adapted * smooth
        m = jnp.max(logits, axis=1, keepdims=True)                  # (TC, 1, D)
        e = jnp.exp(logits - m)                                     # (TC, T, D)
        denom = jnp.sum(e, axis=1)                                  # (TC, D)
        # denom > 0 is constant over T, so max_t(adapted*e/denom) == max_t(adapted*e)/denom:
        # only TC*D reciprocals instead of TC*T*D divides.
        num = jnp.max(adapted * e, axis=1)                          # (TC, D)
        txt = num * pl.reciprocal(denom, approx=True)

        # l2-normalize over features (EUP reciprocal; eps outside the sqrt as in the module).
        n2 = jnp.sum(txt * txt, axis=-1, keepdims=True)             # (TC, 1)
        txt_n = txt * pl.reciprocal(jnp.sqrt(n2) + _L2_EPS, approx=True)

        # Cosine sim with the (already l2-normalized) image vector.  Done as a (1,D)x(D,TC)
        # matvec on the otherwise-idle MXU so the result lands lane-dense as a (1, TC) row.
        iv = imgv_ref[pl.ds(i, 1), :]                               # (1, D)
        sim_row = jax.lax.dot_general(
            iv, txt_n, (((1,), (1,)), ((), ())),
            preferred_element_type=jnp.float32)                     # (1, TC)

        # Direct dynamic-sublane store into the output block (no accumulator, no scatter).
        o_ref[pl.ds(i, 1), :] = sim_row.astype(o_ref.dtype)
        return carry

    jax.lax.fori_loop(0, n_img, per_image, 0)


# ---------------- wrapper ----------------


@functools.partial(jax.jit,
                   static_argnames=("smooth", "weight_dtype", "cap_tile", "img_tile"))
def adaptive_embedding_i2t(params, img_embed, cap_embed, lens=None, smooth=1.0,
                           weight_dtype=jnp.float32, cap_tile=None, img_tile=None):
    """img_embed: (Bi, R, D), cap_embed: (Bc, T, D)  ->  sims: (Bi, Bc)."""
    # TODO(synk): `lens` is accepted but unused, matching the original forward.
    del lens
    img_embed = img_embed.astype(jnp.float32)
    cap_embed = cap_embed.astype(jnp.float32)
    Bi, R, D = img_embed.shape
    Bc, T, Dc = cap_embed.shape
    assert D == Dc

    budget, vmem_limit, want_split = _hw_budgets()

    # Fuse fc_gamma / fc_beta into one (D, 2D) weight (optionally bf16 for large D / v7x VMEM).
    w_gb = jnp.concatenate([params["wg"], params["wb"]], axis=1).astype(weight_dtype)
    b_gb = jnp.concatenate([params["bg"], params["bb"]]).reshape(1, 2 * D).astype(jnp.float32)
    bn_m = params["bn_mean"].reshape(1, D).astype(jnp.float32)
    bn_v = params["bn_var"].reshape(1, D).astype(jnp.float32)

    # ---- stage 1: per-image query -> folded (scale, offset) + l2-normalized image vector ----
    TB = int(img_tile) if img_tile is not None else _pick_tile_rows(R * D, budget)
    if TB >= Bi:
        TB = Bi                              # single tile: block == full dims, no padding
    else:
        TB = max(8, (TB // 8) * 8)           # multi-tile: sublane-aligned, ragged tail is masked
    n_it = _cdiv(Bi, TB)

    vec_sds = jax.ShapeDtypeStruct((Bi, D), jnp.float32)
    scale, offset, imgv = pl.pallas_call(
        functools.partial(_img_query_kernel, d=D),
        out_shape=(vec_sds, vec_sds, vec_sds),
        grid=(n_it,),
        in_specs=[
            pl.BlockSpec((TB, R, D), lambda i: (i, 0, 0)),
            pl.BlockSpec((D, 2 * D), lambda i: (0, 0)),
            pl.BlockSpec((1, 2 * D), lambda i: (0, 0)),
            pl.BlockSpec((1, D), lambda i: (0, 0)),
            pl.BlockSpec((1, D), lambda i: (0, 0)),
        ],
        out_specs=(
            pl.BlockSpec((TB, D), lambda i: (i, 0)),
            pl.BlockSpec((TB, D), lambda i: (i, 0)),
            pl.BlockSpec((TB, D), lambda i: (i, 0)),
        ),
        compiler_params=pltpu.CompilerParams(
            dimension_semantics=("parallel",), vmem_limit_bytes=vmem_limit),
    )(img_embed, w_gb, b_gb, bn_m, bn_v)

    # ---- stage 2: fused ADAPT + Fovea + max + l2norm + cosine sim --------------------------
    if cap_tile is not None:
        TC = int(cap_tile)
    else:
        TC = _pick_tile_rows(T * D, budget)
        if want_split and Bc >= 64:
            # Multi-TensorCore chips (v7x): keep >= ~8 caption tiles on the "parallel" axis.
            TC = min(TC, max(8, _round_up(_cdiv(Bc, 8), 8)))
    if TC >= Bc:
        TC = Bc                              # single tile: no padding at all
    else:
        TC = max(8, (TC // 8) * 8)
    n_ct = _cdiv(Bc, TC)

    cost = pl.CostEstimate(
        flops=int(8 * Bi * n_ct * TC * T * D + 2 * Bi * n_ct * TC * D),
        transcendentals=int(Bi * n_ct * TC * T * D),
        bytes_accessed=int(4 * (Bc * T * D + 3 * Bi * D + n_ct * TC * Bi)),
    )
    kernel = functools.partial(_adapt_fovea_sim_kernel, smooth=float(smooth), n_img=Bi)
    sims3 = pl.pallas_call(
        kernel,
        out_shape=jax.ShapeDtypeStruct((n_ct, Bi, TC), jnp.float32),   # captions on lanes
        grid=(n_ct,),
        in_specs=[
            pl.BlockSpec((TC, T, D), lambda c: (c, 0, 0)),   # each caption DMA'd exactly once
            pl.BlockSpec((Bi, D), lambda c: (0, 0)),          # per-image vectors resident
            pl.BlockSpec((Bi, D), lambda c: (0, 0)),
            pl.BlockSpec((Bi, D), lambda c: (0, 0)),
        ],
        out_specs=pl.BlockSpec((None, Bi, TC), lambda c: (c, 0, 0)),
        compiler_params=pltpu.CompilerParams(
            dimension_semantics=("parallel",), vmem_limit_bytes=vmem_limit),
        cost_estimate=cost,
    )(cap_embed, scale, offset, imgv)

    # Tiny reshape of the (n_ct, Bi, TC) result to (Bi, Bc); ragged-tail columns are dropped.
    sims = jnp.transpose(sims3, (1, 0, 2)).reshape(Bi, n_ct * TC)
    return sims[:, :Bc]


# ---------------- parameters (deterministic, mirroring the PyTorch module) ----------------


def init_params(key, latent_size):
    d = latent_size
    kg, kb, km, kv, kbg, kbb = jax.random.split(key, 6)
    bound = 1.0 / (d ** 0.5)
    # ADAPT fc_gamma / fc_beta: Linear(D, D).  Weights stored transposed: (in, out).
    wg = jax.random.uniform(kg, (d, d), jnp.float32, -bound, bound)
    wb = jax.random.uniform(kb, (d, d), jnp.float32, -bound, bound)
    bg = jax.random.uniform(kbg, (d,), jnp.float32, -bound, bound)
    bb = jax.random.uniform(kbb, (d,), jnp.float32, -bound, bound)
    # Non-trivial BatchNorm running stats (default init would be mean=0, var=1).
    bn_mean = 0.1 * jax.random.normal(km, (d,), jnp.float32)
    bn_var = jax.random.uniform(kv, (d,), jnp.float32, 0.5, 1.5)
    return dict(wg=wg, bg=bg, wb=wb, bb=bb, bn_mean=bn_mean, bn_var=bn_var)


# ---------------- reference (pure JAX) for sanity check ----------------


def adaptive_embedding_i2t_ref(params, img_embed, cap_embed, smooth=1.0):
    wg, bg = params["wg"], params["bg"]
    wb, bb = params["wb"], params["bb"]
    bn_m, bn_v = params["bn_mean"], params["bn_var"]

    cap = jnp.transpose(cap_embed.astype(jnp.float32), (0, 2, 1))    # (Bc, D, T)
    img = jnp.transpose(img_embed.astype(jnp.float32), (0, 2, 1))    # (Bi, D, R)
    cap = (cap - bn_m[None, :, None]) / jnp.sqrt(bn_v[None, :, None] + _BN_EPS)
    img_mean = img.mean(-1)                                          # (Bi, D)

    rows = []
    for i in range(img_mean.shape[0]):
        q = img_mean[i:i + 1]                                        # (1, D)
        gam = q @ wg + bg                                            # (1, D)
        bet = q @ wb + bb
        adapted = cap * (1.0 + gam[0])[None, :, None] + bet[0][None, :, None]
        mask = jax.nn.softmax(adapted * smooth, axis=-1)
        gated = mask * adapted
        txt = gated.max(axis=-1)                                     # (Bc, D)
        txt = txt / (jnp.sqrt(jnp.sum(txt * txt, -1, keepdims=True)) + _L2_EPS)
        qn = q / (jnp.sqrt(jnp.sum(q * q, -1, keepdims=True)) + _L2_EPS)
        rows.append((qn @ txt.T)[0])                                 # (Bc,)
    return jnp.stack(rows, axis=0)                                   # (Bi, Bc)


if __name__ == "__main__":
    key = jax.random.PRNGKey(0)
    k_img, k_cap, k_p, k_img2, k_cap2, k_p2 = jax.random.split(key, 6)

    # ---- test 1: small shapes, single caption / image tile (default smooth=1 path) ----
    Bi, R, D = 2, 36, 32        # images, regions per image, latent size (small demo)
    Bc, T = 3, 8                # captions, caption length
    SMOOTH = 1.0                # AdaptiveEmbeddingI2T default gamma=1 -> Fovea smooth=1

    img_embed = jax.random.normal(k_img, (Bi, R, D), jnp.float32)
    cap_embed = jax.random.normal(k_cap, (Bc, T, D), jnp.float32)
    params = init_params(k_p, D)

    sims = adaptive_embedding_i2t(params, img_embed, cap_embed, lens=None, smooth=SMOOTH)
    sims = jax.block_until_ready(sims)
    ref = adaptive_embedding_i2t_ref(params, img_embed, cap_embed, smooth=SMOOTH)
    assert sims.shape == (Bi, Bc), sims.shape
    # Tolerance loosened vs. strict f32 because of pl.reciprocal(approx=True) on the EUP.
    err = float(jnp.max(jnp.abs(sims - ref)))
    assert jnp.allclose(sims, ref, atol=5e-3, rtol=5e-3), err

    # ---- test 2: forced multi-tile / ragged-tail path, smooth != 1 ----
    Bi2, R2, D2, Bc2, T2 = 10, 12, 32, 20, 8
    img2 = jax.random.normal(k_img2, (Bi2, R2, D2), jnp.float32)
    cap2 = jax.random.normal(k_cap2, (Bc2, T2, D2), jnp.float32)
    params2 = init_params(k_p2, D2)

    sims2 = adaptive_embedding_i2t(params2, img2, cap2, lens=None, smooth=2.0,
                                   cap_tile=8, img_tile=8)
    sims2 = jax.block_until_ready(sims2)
    ref2 = adaptive_embedding_i2t_ref(params2, img2, cap2, smooth=2.0)
    assert sims2.shape == (Bi2, Bc2), sims2.shape
    err2 = float(jnp.max(jnp.abs(sims2 - ref2)))
    assert jnp.allclose(sims2, ref2, atol=5e-3, rtol=5e-3), err2

    print("KERNEL_OK")
</pallas_src>

<mosaic_0001>
module attributes {stable_mosaic.version = 11 : i64} {
  func.func @_img_query_kernel(%arg0: i32, %arg1: memref<2x36x32xf32, #tpu.memory_space<vmem>>, %arg2: memref<32x64xf32, #tpu.memory_space<vmem>>, %arg3: memref<1x64xf32, #tpu.memory_space<vmem>>, %arg4: memref<1x32xf32, #tpu.memory_space<vmem>>, %arg5: memref<1x32xf32, #tpu.memory_space<vmem>>, %arg6: memref<2x32xf32, #tpu.memory_space<vmem>>, %arg7: memref<2x32xf32, #tpu.memory_space<vmem>>, %arg8: memref<2x32xf32, #tpu.memory_space<vmem>>) attributes {dimension_semantics = [#tpu.dimension_semantics<parallel>], iteration_bounds = array<i64: 1>, scalar_prefetch = 0 : i64, scratch_operands = 0 : i64, tpu.core_type = #tpu.core_type<tc>, window_params = [{transform_indices = @transform_0, window_bounds = array<i64: 2, 36, 32>}, {pipeline_mode = #tpu.pipeline_mode<synchronous>, transform_indices = @transform_1, window_bounds = array<i64: 32, 64>}, {pipeline_mode = #tpu.pipeline_mode<synchronous>, transform_indices = @transform_2, window_bounds = array<i64: 1, 64>}, {pipeline_mode = #tpu.pipeline_mode<synchronous>, transform_indices = @transform_3, window_bounds = array<i64: 1, 32>}, {pipeline_mode = #tpu.pipeline_mode<synchronous>, transform_indices = @transform_4, window_bounds = array<i64: 1, 32>}, {transform_indices = @transform_5, window_bounds = array<i64: 2, 32>}, {transform_indices = @transform_6, window_bounds = array<i64: 2, 32>}, {transform_indices = @transform_7, window_bounds = array<i64: 2, 32>}]} {
    %c0 = arith.constant 0 : index
    %c0_0 = arith.constant 0 : index
    %c0_1 = arith.constant 0 : index
    %0 = vector.load %arg1[%c0, %c0_0, %c0_1] : memref<2x36x32xf32, #tpu.memory_space<vmem>>, vector<2x36x32xf32>
    %cst = arith.constant dense<0.000000e+00> : vector<2x32xf32>
    %1 = vector.multi_reduction <add>, %0, %cst [1] : vector<2x36x32xf32> to vector<2x32xf32>
    %cst_2 = arith.constant 3.600000e+01 : f32
    %2 = vector.broadcast %cst_2 : f32 to vector<2x32xf32>
    %3 = arith.divf %1, %2 : vector<2x32xf32>
    %c0_3 = arith.constant 0 : index
    %c0_4 = arith.constant 0 : index
    %4 = vector.load %arg2[%c0_3, %c0_4] : memref<32x64xf32, #tpu.memory_space<vmem>>, vector<32x64xf32>
    %cst_5 = arith.constant dense<0.000000e+00> : vector<2x64xf32>
    %5 = tpu.matmul %3, %4, %cst_5 {dimension_numbers = #tpu.dot_dimension_numbers<[1], [0], [0], [1], [0, 0, 1, 1], [], []>} : vector<2x32xf32>, vector<32x64xf32>, vector<2x64xf32> -> vector<2x64xf32>
    %c0_6 = arith.constant 0 : index
    %c0_7 = arith.constant 0 : index
    %6 = vector.load %arg3[%c0_6, %c0_7] : memref<1x64xf32, #tpu.memory_space<vmem>>, vector<1x64xf32>
    %7 = vector.broadcast %6 : vector<1x64xf32> to vector<2x64xf32>
    %8 = arith.addf %5, %7 : vector<2x64xf32>
    %9 = vector.extract_strided_slice %8 {offsets = [0, 0], sizes = [2, 32], strides = [1, 1]} : vector<2x64xf32> to vector<2x32xf32>
    %10 = vector.extract_strided_slice %8 {offsets = [0, 32], sizes = [2, 32], strides = [1, 1]} : vector<2x64xf32> to vector<2x32xf32>
    %c0_8 = arith.constant 0 : index
    %c0_9 = arith.constant 0 : index
    %11 = vector.load %arg5[%c0_8, %c0_9] : memref<1x32xf32, #tpu.memory_space<vmem>>, vector<1x32xf32>
    %cst_10 = arith.constant 9.99999974E-6 : f32
    %12 = vector.broadcast %cst_10 : f32 to vector<1x32xf32>
    %13 = arith.addf %11, %12 : vector<1x32xf32>
    %14 = math.rsqrt %13 : vector<1x32xf32>
    %cst_11 = arith.constant 1.000000e+00 : f32
    %15 = vector.broadcast %cst_11 : f32 to vector<2x32xf32>
    %16 = arith.addf %15, %9 : vector<2x32xf32>
    %17 = vector.broadcast %14 : vector<1x32xf32> to vector<2x32xf32>
    %18 = arith.mulf %17, %16 : vector<2x32xf32>
    %c0_12 = arith.constant 0 : index
    %c0_13 = arith.constant 0 : index
    %19 = vector.load %arg6[%c0_12, %c0_13] : memref<2x32xf32, #tpu.memory_space<vmem>>, vector<2x32xf32>
    tpu.vector_store %arg6[%c0_12, %c0_13], %18 {strides = array<i32>} : memref<2x32xf32, #tpu.memory_space<vmem>>, vector<2x32xf32>,
    %c0_14 = arith.constant 0 : index
    %c0_15 = arith.constant 0 : index
    %20 = vector.load %arg4[%c0_14, %c0_15] : memref<1x32xf32, #tpu.memory_space<vmem>>, vector<1x32xf32>
    %21 = vector.broadcast %20 : vector<1x32xf32> to vector<2x32xf32>
    %22 = arith.mulf %21, %18 : vector<2x32xf32>
    %23 = arith.subf %10, %22 : vector<2x32xf32>
    %c0_16 = arith.constant 0 : index
    %c0_17 = arith.constant 0 : index
    %24 = vector.load %arg7[%c0_16, %c0_17] : memref<2x32xf32, #tpu.memory_space<vmem>>, vector<2x32xf32>
    tpu.vector_store %arg7[%c0_16, %c0_17], %23 {strides = array<i32>} : memref<2x32xf32, #tpu.memory_space<vmem>>, vector<2x32xf32>,
    %25 = arith.mulf %3, %3 : vector<2x32xf32>
    %cst_18 = arith.constant dense<0.000000e+00> : vector<2xf32>
    %26 = vector.multi_reduction <add>, %25, %cst_18 [1] : vector<2x32xf32> to vector<2xf32>
    %27 = vector.shape_cast %26 : vector<2xf32> to vector<2x1xf32>
    %28 = math.sqrt %27 : vector<2x1xf32>
    %cst_19 = arith.constant 9.99999993E-9 : f32
    %29 = vector.broadcast %cst_19 : f32 to vector<2x1xf32>
    %30 = arith.addf %28, %29 : vector<2x1xf32>
    %31 = vector.broadcast %30 : vector<2x1xf32> to vector<2x32xf32>
    %32 = arith.divf %3, %31 : vector<2x32xf32>
    %c0_20 = arith.constant 0 : index
    %c0_21 = arith.constant 0 : index
    %33 = vector.load %arg8[%c0_20, %c0_21] : memref<2x32xf32, #tpu.memory_space<vmem>>, vector<2x32xf32>
    tpu.vector_store %arg8[%c0_20, %c0_21], %32 {strides = array<i32>} : memref<2x32xf32, #tpu.memory_space<vmem>>, vector<2x32xf32>,
    return
  }
  func.func @transform_0(%arg0: i32) -> (i32, i32, i32) {
    %c0_i32 = arith.constant 0 : i32
    %c0_i32_0 = arith.constant 0 : i32
    %c0_i32_1 = arith.constant 0 : i32
    return %arg0, %c0_i32, %c0_i32_0 : i32, i32, i32
  }
  func.func @transform_1(%arg0: i32) -> (i32, i32) {
    %c0_i32 = arith.constant 0 : i32
    %c0_i32_0 = arith.constant 0 : i32
    %c0_i32_1 = arith.constant 0 : i32
    return %c0_i32, %c0_i32_0 : i32, i32
  }
  func.func @transform_2(%arg0: i32) -> (i32, i32) {
    %c0_i32 = arith.constant 0 : i32
    %c0_i32_0 = arith.constant 0 : i32
    %c0_i32_1 = arith.constant 0 : i32
    return %c0_i32, %c0_i32_0 : i32, i32
  }
  func.func @transform_3(%arg0: i32) -> (i32, i32) {
    %c0_i32 = arith.constant 0 : i32
    %c0_i32_0 = arith.constant 0 : i32
    %c0_i32_1 = arith.constant 0 : i32
    return %c0_i32, %c0_i32_0 : i32, i32
  }
  func.func @transform_4(%arg0: i32) -> (i32, i32) {
    %c0_i32 = arith.constant 0 : i32
    %c0_i32_0 = arith.constant 0 : i32
    %c0_i32_1 = arith.constant 0 : i32
    return %c0_i32, %c0_i32_0 : i32, i32
  }
  func.func @transform_5(%arg0: i32) -> (i32, i32) {
    %c0_i32 = arith.constant 0 : i32
    %c0_i32_0 = arith.constant 0 : i32
    return %arg0, %c0_i32 : i32, i32
  }
  func.func @transform_6(%arg0: i32) -> (i32, i32) {
    %c0_i32 = arith.constant 0 : i32
    %c0_i32_0 = arith.constant 0 : i32
    return %arg0, %c0_i32 : i32, i32
  }
  func.func @transform_7(%arg0: i32) -> (i32, i32) {
    %c0_i32 = arith.constant 0 : i32
    %c0_i32_0 = arith.constant 0 : i32
    return %arg0, %c0_i32 : i32, i32
  }
}

module attributes {stable_mosaic.version = 11 : i64} {
  func.func @_adapt_fovea_sim_kernel(%arg0: i32, %arg1: memref<3x8x32xf32, #tpu.memory_space<vmem>>, %arg2: memref<2x32xf32, #tpu.memory_space<vmem>>, %arg3: memref<2x32xf32, #tpu.memory_space<vmem>>, %arg4: memref<2x32xf32, #tpu.memory_space<vmem>>, %arg5: memref<1x2x3xf32, #tpu.memory_space<vmem>>) attributes {dimension_semantics = [#tpu.dimension_semantics<parallel>], iteration_bounds = array<i64: 1>, scalar_prefetch = 0 : i64, scratch_operands = 0 : i64, tpu.core_type = #tpu.core_type<tc>, window_params = [{transform_indices = @transform_0, window_bounds = array<i64: 3, 8, 32>}, {pipeline_mode = #tpu.pipeline_mode<synchronous>, transform_indices = @transform_1, window_bounds = array<i64: 2, 32>}, {pipeline_mode = #tpu.pipeline_mode<synchronous>, transform_indices = @transform_2, window_bounds = array<i64: 2, 32>}, {pipeline_mode = #tpu.pipeline_mode<synchronous>, transform_indices = @transform_3, window_bounds = array<i64: 2, 32>}, {transform_indices = @transform_4, window_bounds = array<i64: 1, 2, 3>}]} {
    %c0_i32 = arith.constant 0 : i32
    %c2_i32 = arith.constant 2 : i32
    %0 = arith.addi %c0_i32, %c2_i32 : i32
    %c1_i32 = arith.constant 1 : i32
    scf.for %arg6 = %c0_i32 to %0 step %c1_i32  : i32 {
      %c0 = arith.constant 0 : index
      %c0_1 = arith.constant 0 : index
      %c0_2 = arith.constant 0 : index
      %1 = vector.load %arg1[%c0, %c0_1, %c0_2] : memref<3x8x32xf32, #tpu.memory_space<vmem>>, vector<3x8x32xf32>
      %2 = arith.index_cast %arg6 : i32 to index
      %c0_3 = arith.constant 0 : index
      %3 = vector.load %arg2[%2, %c0_3] : memref<2x32xf32, #tpu.memory_space<vmem>>, vector<1x32xf32>
      %4 = vector.shape_cast %3 : vector<1x32xf32> to vector<1x1x32xf32>
      %5 = arith.index_cast %arg6 : i32 to index
      %c0_4 = arith.constant 0 : index
      %6 = vector.load %arg3[%5, %c0_4] : memref<2x32xf32, #tpu.memory_space<vmem>>, vector<1x32xf32>
      %7 = vector.shape_cast %6 : vector<1x32xf32> to vector<1x1x32xf32>
      %8 = vector.broadcast %4 : vector<1x1x32xf32> to vector<3x8x32xf32>
      %9 = arith.mulf %1, %8 : vector<3x8x32xf32>
      %10 = vector.broadcast %7 : vector<1x1x32xf32> to vector<3x8x32xf32>
      %11 = arith.addf %9, %10 : vector<3x8x32xf32>
      %cst = arith.constant dense<0xFF800000> : vector<3x32xf32>
      %12 = vector.multi_reduction <maximumf>, %11, %cst [1] : vector<3x8x32xf32> to vector<3x32xf32>
      %13 = vector.shape_cast %12 : vector<3x32xf32> to vector<3x1x32xf32>
      %14 = vector.broadcast %13 : vector<3x1x32xf32> to vector<3x8x32xf32>
      %15 = arith.subf %11, %14 : vector<3x8x32xf32>
      %16 = math.exp %15 : vector<3x8x32xf32>
      %cst_5 = arith.constant dense<0.000000e+00> : vector<3x32xf32>
      %17 = vector.multi_reduction <add>, %16, %cst_5 [1] : vector<3x8x32xf32> to vector<3x32xf32>
      %18 = arith.mulf %11, %16 : vector<3x8x32xf32>
      %cst_6 = arith.constant dense<0xFF800000> : vector<3x32xf32>
      %19 = vector.multi_reduction <maximumf>, %18, %cst_6 [1] : vector<3x8x32xf32> to vector<3x32xf32>
      %20 = tpu.reciprocal %17 {approx = true} : vector<3x32xf32> -> vector<3x32xf32>
      %21 = arith.mulf %19, %20 : vector<3x32xf32>
      %22 = arith.mulf %21, %21 : vector<3x32xf32>
      %cst_7 = arith.constant dense<0.000000e+00> : vector<3xf32>
      %23 = vector.multi_reduction <add>, %22, %cst_7 [1] : vector<3x32xf32> to vector<3xf32>
      %24 = vector.shape_cast %23 : vector<3xf32> to vector<3x1xf32>
      %25 = math.sqrt %24 : vector<3x1xf32>
      %cst_8 = arith.constant 9.99999993E-9 : f32
      %26 = vector.broadcast %cst_8 : f32 to vector<3x1xf32>
      %27 = arith.addf %25, %26 : vector<3x1xf32>
      %28 = tpu.reciprocal %27 {approx = true} : vector<3x1xf32> -> vector<3x1xf32>
      %29 = vector.broadcast %28 : vector<3x1xf32> to vector<3x32xf32>
      %30 = arith.mulf %21, %29 : vector<3x32xf32>
      %31 = arith.index_cast %arg6 : i32 to index
      %c0_9 = arith.constant 0 : index
      %32 = vector.load %arg4[%31, %c0_9] : memref<2x32xf32, #tpu.memory_space<vmem>>, vector<1x32xf32>
      %cst_10 = arith.constant dense<0.000000e+00> : vector<1x3xf32>
      %33 = tpu.matmul %32, %30, %cst_10 {dimension_numbers = #tpu.dot_dimension_numbers<[1], [1], [0], [0], [0, 0, 1, 0], [], []>} : vector<1x32xf32>, vector<3x32xf32>, vector<1x3xf32> -> vector<1x3xf32>
      %c0_11 = arith.constant 0 : index
      %34 = arith.index_cast %arg6 : i32 to index
      %c0_12 = arith.constant 0 : index
      %35 = vector.load %arg5[%c0_11, %34, %c0_12] : memref<1x2x3xf32, #tpu.memory_space<vmem>>, vector<1x1x3xf32>
      %36 = vector.shape_cast %35 : vector<1x1x3xf32> to vector<1x3xf32>
      %37 = vector.shape_cast %33 : vector<1x3xf32> to vector<1x1x3xf32>
      tpu.vector_store %arg5[%c0_11, %34, %c0_12], %37 {strides = array<i32>} : memref<1x2x3xf32, #tpu.memory_space<vmem>>, vector<1x1x3xf32>,
    }
    %c2_i32_0 = arith.constant 2 : i32
    return
  }
  func.func @transform_0(%arg0: i32) -> (i32, i32, i32) {
    %c0_i32 = arith.constant 0 : i32
    %c0_i32_0 = arith.constant 0 : i32
    %c0_i32_1 = arith.constant 0 : i32
    return %arg0, %c0_i32, %c0_i32_0 : i32, i32, i32
  }
  func.func @transform_1(%arg0: i32) -> (i32, i32) {
    %c0_i32 = arith.constant 0 : i32
    %c0_i32_0 = arith.constant 0 : i32
    %c0_i32_1 = arith.constant 0 : i32
    return %c0_i32, %c0_i32_0 : i32, i32
  }
  func.func @transform_2(%arg0: i32) -> (i32, i32) {
    %c0_i32 = arith.constant 0 : i32
    %c0_i32_0 = arith.constant 0 : i32
    %c0_i32_1 = arith.constant 0 : i32
    return %c0_i32, %c0_i32_0 : i32, i32
  }
  func.func @transform_3(%arg0: i32) -> (i32, i32) {
    %c0_i32 = arith.constant 0 : i32
    %c0_i32_0 = arith.constant 0 : i32
    %c0_i32_1 = arith.constant 0 : i32
    return %c0_i32, %c0_i32_0 : i32, i32
  }
  func.func @transform_4(%arg0: i32) -> (i32, i32, i32) {
    %c0_i32 = arith.constant 0 : i32
    %c0_i32_0 = arith.constant 0 : i32
    %c0_i32_1 = arith.constant 0 : i32
    return %arg0, %c0_i32, %c0_i32_0 : i32, i32, i32
  }
}

</mosaic_0001>

<llo_original>
// kernel: adaptive_embedding_i2t.3
$region0: #{adaptive_embedding_i2t.3}
  #allocation0 [shape = 'u32[]', space=smem, size = 0x4, offset = 0x4, fixed_abs, tag = 'smem constant byte address 0x4 - core index']
  #allocation1 [shape = 'u32[72,128]{1,0:T(1,128)}', space=vmem, size = 0x9000, scoped, tag = 'internal scratch']
  %s0 = inlined_call_operand.vmem [shape: f32[3,8,32], index: 0, kind: input, shape index: {}]
  %s1 = inlined_call_operand.vmem [shape: f32[2,32], index: 1, kind: input, shape index: {}]
  %s2 = inlined_call_operand.vmem [shape: f32[2,32], index: 2, kind: input, shape index: {}]
  %s3 = inlined_call_operand.vmem [shape: f32[2,32], index: 3, kind: input, shape index: {}]
  %s4 = inlined_call_operand.hbm [shape: f32[1,2,3], index: 4, kind: output, shape index: {}]
  %s5 = sld [smem:[#allocation0]]
  $region33: #{adaptive_embedding_i2t.3} parent=0
    _
  %s7 = ssub.s32 1, %s5
  %s8 = scalar_select 0, %s7, %s5
  $region1: #{adaptive_embedding_i2t.3} parent=0
    #allocation2 [shape = 'u8[1024]{0}', space=vmem, size = 0x400, scoped, tag = 'output window, operand 0, single buffered']
    #allocation3 [shape = 's32[1]{0}', space=sflag, size = 0x4, scoped, tag = 'scoped memory for adaptive_embedding_i2t.3']
    %9 = vsyncpa [#allocation3], 0
    // Predicated region
    $region2: #{adaptive_embedding_i2t.3} parent=1 // pred_check
      _
    $region3: #{adaptive_embedding_i2t.3} parent=1 // pred_check_branch
      %11 = sbr.rel (0) target = $region5
    $region4: #{adaptive_embedding_i2t.3} parent=1 // pred_region
      _
    $region5: #{adaptive_embedding_i2t.3} parent=1 // pred_fallthru
      _
    // Predicated region
    $region6: #{adaptive_embedding_i2t.3} parent=1 // pred_check
      _
    $region7: #{adaptive_embedding_i2t.3} parent=1 // pred_check_branch
      %13 = sbr.rel (0) target = $region9
    $region8: #{adaptive_embedding_i2t.3} parent=1 // pred_region
      _
    $region9: #{adaptive_embedding_i2t.3} parent=1 // pred_fallthru
      _
    // Predicated region
    $region10: #{adaptive_embedding_i2t.3} parent=1 // pred_check
      _
    $region11: #{adaptive_embedding_i2t.3} parent=1 // pred_check_branch
      %15 = sbr.rel (0) target = $region13
    $region12: #{adaptive_embedding_i2t.3} parent=1 // pred_region
      _
    $region13: #{adaptive_embedding_i2t.3} parent=1 // pred_fallthru
      _
    // Predicated region
    $region14: #{adaptive_embedding_i2t.3} parent=1 // pred_check
      _
    $region15: #{adaptive_embedding_i2t.3} parent=1 // pred_check_branch
      %17 = sbr.rel (0) target = $region17
    $region16: #{adaptive_embedding_i2t.3} parent=1 // pred_region
      _
    $region17: #{adaptive_embedding_i2t.3} parent=1 // pred_fallthru
      _
    loop: start=0, step=1, limit=2
    $region18: #{adaptive_embedding_i2t.3} parent=1 // loop_pre_header
      _
    $region19: #{adaptive_embedding_i2t.3} parent=1 // loop_header
      %s19 = sphi 0, %s23
      %p20 = scmp.ge.s32.totalorder %s19, 2
    $region20: #{adaptive_embedding_i2t.3} parent=1 // loop_header_branch
      %22 = sbr.rel (%p20) target = $region24
    $region21: #{adaptive_embedding_i2t.3} parent=1 // loop_body
      %v24 = vld [vmem:[%s0] sm:$0xff]
      %v25 = vld [vmem:[%s0 + $0x8] sm:$0xff]
      %v26 = vld [vmem:[%s0 + $0x10] sm:$0xff]
      %s27 = scalar_lea.vmem %s1, %s19
      %v28 = vld [vmem:[%s27] sm:$0x1]
      %s29 = scalar_lea.vmem %s2, %s19
      %v30 = vld [vmem:[%s29] sm:$0x1]
      %v31 = vperm.slane %v28, 0
      %v32 = vmul.f32 %v24, %v31
      %v33 = vmul.f32 %v25, %v31
      %v34 = vmul.f32 %v26, %v31
      %v35 = vperm.slane %v30, 0
      %v36 = vadd.f32 %v32, %v35
      %v37 = vadd.f32 %v33, %v35
      %v38 = vadd.f32 %v34, %v35
      %vm39 = vcmask 261120
      %v40 = vsel %vm39, %v36, -inf
      %v41 = vrot.slane %v40, 4
      %v42 = vmax.f32 %v40, %v41
      %v43 = vrot.slane %v42, 2
      %v44 = vmax.f32 %v42, %v43
      %v45 = vrot.slane %v44, 1
      %v46 = vmax.f32 %v44, %v45
      %v47 = vsel %vm39, %v37, -inf
      %v48 = vrot.slane %v47, 4
      %v49 = vmax.f32 %v47, %v48
      %v50 = vrot.slane %v49, 2
      %v51 = vmax.f32 %v49, %v50
      %v52 = vrot.slane %v51, 1
      %v53 = vmax.f32 %v51, %v52
      %v54 = vsel %vm39, %v38, -inf
      %v55 = vrot.slane %v54, 4
      %v56 = vmax.f32 %v54, %v55
      %v57 = vrot.slane %v56, 2
      %v58 = vmax.f32 %v56, %v57
      %v59 = vrot.slane %v58, 1
      %v60 = vmax.f32 %v58, %v59
      %v61 = vsub.f32 %v36, %v46
      %v62 = vsub.f32 %v37, %v53
      %v63 = vsub.f32 %v38, %v60
      %v64 = vmul.f32 %v61, 1.442695
      %v65 = vpow.pop %v64
      %v66 = vmul.f32 %v62, 1.442695
      %v67 = vpow.pop %v66
      %v68 = vmul.f32 %v63, 1.442695
      %v69 = vpow.pop %v68
      %v70 = vsel %vm39, %v65, 0.0
      %v71 = vrot.slane %v70, 4
      %v72 = vadd.f32 %v70, %v71
      %v73 = vrot.slane %v72, 2
      %v74 = vadd.f32 %v72, %v73
      %v75 = vrot.slane %v74, 1
      %v76 = vadd.f32 %v74, %v75
      %v77 = vsel %vm39, %v67, 0.0
      %v78 = vrot.slane %v77, 4
      %v79 = vadd.f32 %v77, %v78
      %v80 = vrot.slane %v79, 2
      %v81 = vadd.f32 %v79, %v80
      %v82 = vrot.slane %v81, 1
      %v83 = vadd.f32 %v81, %v82
      %v84 = vsel %vm39, %v69, 0.0
      %v85 = vrot.slane %v84, 4
      %v86 = vadd.f32 %v84, %v85
      %v87 = vrot.slane %v86, 2
      %v88 = vadd.f32 %v86, %v87
      %v89 = vrot.slane %v88, 1
      %v90 = vadd.f32 %v88, %v89
      %v91 = vmul.f32 %v36, %v65
      %v92 = vmul.f32 %v37, %v67
      %v93 = vmul.f32 %v38, %v69
      %v94 = vsel %vm39, %v91, -inf
      %v95 = vrot.slane %v94, 4
      %v96 = vmax.f32 %v94, %v95
      %v97 = vrot.slane %v96, 2
      %v98 = vmax.f32 %v96, %v97
      %v99 = vrot.slane %v98, 1
      %v100 = vmax.f32 %v98, %v99
      %v101 = vsel %vm39, %v92, -inf
      %v102 = vrot.slane %v101, 4
      %v103 = vmax.f32 %v101, %v102
      %v104 = vrot.slane %v103, 2
      %v105 = vmax.f32 %v103, %v104
      %v106 = vrot.slane %v105, 1
      %v107 = vmax.f32 %v105, %v106
      %v108 = vsel %vm39, %v93, -inf
      %v109 = vrot.slane %v108, 4
      %v110 = vmax.f32 %v108, %v109
      %v111 = vrot.slane %v110, 2
      %v112 = vmax.f32 %v110, %v111
      %v113 = vrot.slane %v112, 1
      %v114 = vmax.f32 %v112, %v113
      %v115 = vrcp.pop %v76
      %v116 = vrcp.pop %v83
      %v117 = vrcp.pop %v90
      %v118 = vmul.f32 %v100, %v115
      %v119 = vmul.f32 %v107, %v116
      %v120 = vmul.f32 %v114, %v117
      %v121 = vmul.f32 %v118, %v118
      %v122 = vmul.f32 %v119, %v119
      %v123 = vmul.f32 %v120, %v120
      %vm127 = vcmask 1041409
      %v128 = vsel %vm127, %v122, %v121
      %vm129 = vcmask 1042434
      %v130 = vsel %vm129, %v123, %v128
      %vm132 = vcmask 256000
      %v133 = vsel %vm132, %v130, 0.0
      %134 = vadd.xlane.f32.xlu0 %v133
      %v135 = vpop.xlane.xlu0 %134
      %v136 = vrsqrt.pop %v135
      %v137 = vmul.f32 %v136, %v135
      %v138 = vmul.f32 %v137, %v136
      %v139 = vmul.f32 0.5, %v138
      %v140 = vsub.f32 1.5, %v139
      %v141 = vmul.f32 %v136, %v140
      %v142 = vmul.f32 %v135, %v141
      %vm143 = vcmp.eq.f32.partialorder %v135, inf
      %v144 = vsel %vm143, %v135, %v142
      %vm145 = vcmp.eq.f32.partialorder %v135, 0.0
      %v146 = vand.u32 %v135, 2147483648
      %v147 = vsel %vm145, %v146, %v144
      %v148 = vadd.f32 %v147, 1e-08
      %v149 = vrcp.pop %v148
      %v151 = vrot.slane %v149, 1
      %v152 = vrot.slane %v149, 2
      %v156 = vmul.f32 %v118, %v149
      %v157 = vmul.f32 %v119, %v151
      %v158 = vmul.f32 %v120, %v152
      %s159 = scalar_lea.vmem %s3, %s19
      %v160 = vld [vmem:[%s159] sm:$0x1]
      %v164 = vrot.slane %v157, 7
      %v165 = vsel %vm127, %v164, %v156
      %v166 = vrot.slane %v158, 6
      %v167 = vsel %vm129, %v166, %v165
      %v169 = vsel %vm39, %v160, 0
      %v171 = vsel %vm39, %v167, 0
      %173 = vmatpush.xpose.msra.mxu0 0.0
      %174 = vmatpush.xpose.msra.mxu0 0.0
      %175 = vmatpush.xpose.msra.mxu0 0.0
      %176 = vmatpush.xpose.msra.mxu0 0.0
      %177 = vmatpush.xpose.msra.mxu0 0.0
      %178 = vmatpush.xpose.msra.mxu0 0.0
      %179 = vmatpush.xpose.msra.mxu0 0.0
      %180 = vmatpush.xpose.msra.mxu0 0.0
      %181 = vmatpush.xpose.msra.mxu0 0.0
      %182 = vmatpush.xpose.msra.mxu0 0.0
      %183 = vmatpush.xpose.msra.mxu0 0.0
      %184 = vmatpush.xpose.msra.mxu0 0.0
      %185 = vmatpush.xpose.msra.mxu0 0.0
      %186 = vmatpush.xpose.msra.mxu0 0.0
      %187 = vmatpush.xpose.msra.mxu0 0.0
      %188 = vmatpush.xpose.msra.mxu0 %v171
      %189 = vmatmul.f32.gmra.mxu0 %v169
      %v190 = vpop.f32.mrf.mxu0
      %v191 = vadd.f32 0.0, %v190
      %192 = vdwg.mxu0
      %s193 = scalar_lea.vmem [#allocation2], %s19
      %vm194 = vcmask 16384
      %195 = vst.msk [vmem:[%s193] sm:$0x1] %vm194, %v191
    $region22: #{adaptive_embedding_i2t.3} parent=1 // loop_footer
      %s23 = sadd.s32 1, %s19
    $region23: #{adaptive_embedding_i2t.3} parent=1 // loop_footer_branch
      %18 = sbr.rel target = $region19
    $region24: #{adaptive_embedding_i2t.3} parent=1 // loop_exit
      _
    // Predicated region
    $region25: #{adaptive_embedding_i2t.3} parent=1 // pred_check
      _
    $region26: #{adaptive_embedding_i2t.3} parent=1 // pred_check_branch
      %197 = sbr.rel (0) target = $region28
    $region27: #{adaptive_embedding_i2t.3} parent=1 // pred_region
      %199 = vsyncadd [#allocation3], 0
      %s201 = sshll.u32 [#allocation2], 4
      %s202 = int_to_ptr.vmem [resolvable:$true] %s201
      %s203 = sshll.u32 %s4, 4
      %s204 = int_to_ptr.hbm [resolvable:$true] %s203
      %206 = dma.vmem_to_hbm [thread:$0]  %s202, 32, %s204, [#allocation3]
    $region28: #{adaptive_embedding_i2t.3} parent=1 // pred_fallthru
      _
    // Predicated region
    $region29: #{adaptive_embedding_i2t.3} parent=1 // pred_check
      _
    $region30: #{adaptive_embedding_i2t.3} parent=1 // pred_check_branch
      %208 = sbr.rel (0) target = $region32
    $region31: #{adaptive_embedding_i2t.3} parent=1 // pred_region
      %210 = dma.done [#allocation3], 32
    $region32: #{adaptive_embedding_i2t.3} parent=1 // pred_fallthru
      _
    %211 = vsyncpa [#allocation3], 1

// kernel: adaptive_embedding_i2t.2
$region0: #{adaptive_embedding_i2t.2}
  #allocation0 [shape = 'u32[]', space=smem, size = 0x4, offset = 0x4, fixed_abs, tag = 'smem constant byte address 0x4 - core index']
  #allocation1 [shape = 'u32[72,128]{1,0:T(1,128)}', space=vmem, size = 0x9000, scoped, tag = 'internal scratch']
  %s0 = inlined_call_operand.vmem [shape: f32[2,36,32], index: 0, kind: input, shape index: {}]
  %s1 = inlined_call_operand.vmem [shape: f32[32,64], index: 1, kind: input, shape index: {}]
  %s2 = inlined_call_operand.vmem [shape: f32[1,64], index: 2, kind: input, shape index: {}]
  %s3 = inlined_call_operand.vmem [shape: f32[1,32], index: 3, kind: input, shape index: {}]
  %s4 = inlined_call_operand.vmem [shape: f32[1,32], index: 4, kind: input, shape index: {}]
  %s5 = inlined_call_operand.vmem [shape: f32[2,32], index: 5, kind: output, shape index: {0}]
  %s6 = inlined_call_operand.vmem [shape: f32[2,32], index: 6, kind: output, shape index: {1}]
  %s7 = inlined_call_operand.vmem [shape: f32[2,32], index: 7, kind: output, shape index: {2}]
  %8 = xla_tuple %s5, %s6, %s7
  %s9 = sld [smem:[#allocation0]]
  $region46: #{adaptive_embedding_i2t.2} parent=0
    _
  %s11 = ssub.s32 1, %s9
  %s12 = scalar_select 0, %s11, %s9
  // Predicated region
  $region2: #{adaptive_embedding_i2t.2} parent=0 // pred_check
    _
  $region3: #{adaptive_embedding_i2t.2} parent=0 // pred_check_branch
    %14 = sbr.rel (0) target = $region5
  $region4: #{adaptive_embedding_i2t.2} parent=0 // pred_region
    _
  $region5: #{adaptive_embedding_i2t.2} parent=0 // pred_fallthru
    _
  // Predicated region
  $region6: #{adaptive_embedding_i2t.2} parent=0 // pred_check
    _
  $region7: #{adaptive_embedding_i2t.2} parent=0 // pred_check_branch
    %16 = sbr.rel (0) target = $region9
  $region8: #{adaptive_embedding_i2t.2} parent=0 // pred_region
    _
  $region9: #{adaptive_embedding_i2t.2} parent=0 // pred_fallthru
    _
  // Predicated region
  $region10: #{adaptive_embedding_i2t.2} parent=0 // pred_check
    _
  $region11: #{adaptive_embedding_i2t.2} parent=0 // pred_check_branch
    %18 = sbr.rel (0) target = $region13
  $region12: #{adaptive_embedding_i2t.2} parent=0 // pred_region
    _
  $region13: #{adaptive_embedding_i2t.2} parent=0 // pred_fallthru
    _
  // Predicated region
  $region14: #{adaptive_embedding_i2t.2} parent=0 // pred_check
    _
  $region15: #{adaptive_embedding_i2t.2} parent=0 // pred_check_branch
    %20 = sbr.rel (0) target = $region17
  $region16: #{adaptive_embedding_i2t.2} parent=0 // pred_region
    _
  $region17: #{adaptive_embedding_i2t.2} parent=0 // pred_fallthru
    _
  // Predicated region
  $region18: #{adaptive_embedding_i2t.2} parent=0 // pred_check
    _
  $region19: #{adaptive_embedding_i2t.2} parent=0 // pred_check_branch
    %22 = sbr.rel (0) target = $region21
  $region20: #{adaptive_embedding_i2t.2} parent=0 // pred_region
    _
  $region21: #{adaptive_embedding_i2t.2} parent=0 // pred_fallthru
    _
  %v23 = vld [vmem:[%s0] sm:$0xff]
  %v24 = vld [vmem:[%s0 + $0x8] sm:$0xff]
  %v25 = vld [vmem:[%s0 + $0x10] sm:$0xff]
  %v26 = vld [vmem:[%s0 + $0x18] sm:$0xff]
  %v27 = vld [vmem:[%s0 + $0x20] sm:$0xf]
  %v28 = vld [vmem:[%s0 + $0x28] sm:$0xff]
  %v29 = vld [vmem:[%s0 + $0x30] sm:$0xff]
  %v30 = vld [vmem:[%s0 + $0x38] sm:$0xff]
  %v31 = vld [vmem:[%s0 + $0x40] sm:$0xff]
  %v32 = vld [vmem:[%s0 + $0x48] sm:$0xf]
  %vm33 = vcmask 261120
  %v34 = vsel %vm33, %v23, 0.0
  %v35 = vsel %vm33, %v24, 0.0
  %v36 = vadd.f32 %v34, %v35
  %v37 = vsel %vm33, %v25, 0.0
  %v38 = vadd.f32 %v36, %v37
  %v39 = vsel %vm33, %v26, 0.0
  %v40 = vadd.f32 %v38, %v39
  %vm41 = vcmask 257024
  %v42 = vsel %vm41, %v27, 0.0
  %v43 = vadd.f32 %v40, %v42
  %v44 = vrot.slane %v43, 4
  %v45 = vadd.f32 %v43, %v44
  %v46 = vrot.slane %v45, 2
  %v47 = vadd.f32 %v45, %v46
  %v48 = vrot.slane %v47, 1
  %v49 = vadd.f32 %v47, %v48
  %v50 = vsel %vm33, %v28, 0.0
  %v51 = vsel %vm33, %v29, 0.0
  %v52 = vadd.f32 %v50, %v51
  %v53 = vsel %vm33, %v30, 0.0
  %v54 = vadd.f32 %v52, %v53
  %v55 = vsel %vm33, %v31, 0.0
  %v56 = vadd.f32 %v54, %v55
  %v57 = vsel %vm41, %v32, 0.0
  %v58 = vadd.f32 %v56, %v57
  %v59 = vrot.slane %v58, 4
  %v60 = vadd.f32 %v58, %v59
  %v61 = vrot.slane %v60, 2
  %v62 = vadd.f32 %v60, %v61
  %v63 = vrot.slane %v62, 1
  %v64 = vadd.f32 %v62, %v63
  %v65 = vrcp.pop 36.0
  %v66 = vmul.f32 36.0, %v65
  %v67 = vsub.f32 1.0, %v66
  %v68 = vmul.f32 %v65, %v67
  %v69 = vadd.f32 %v65, %v68
  %vm70 = vweird.f32 %v65
  %v71 = vsel %vm70, %v65, %v69
  %v72 = vmul.f32 %v49, %v71
  %v73 = vmul.f32 %v64, %v71
  %v74 = vld [vmem:[%s1] sm:$0xff]
  %v75 = vld [vmem:[%s1 + $0x8] sm:$0xff]
  %v76 = vld [vmem:[%s1 + $0x10] sm:$0xff]
  %v77 = vld [vmem:[%s1 + $0x18] sm:$0xff]
  %v78 = vld [vmem:[%s2] sm:$0x1]
  %v80 = vperm.slane %v78, 0
  %vm84 = vcmask 1041409
  %v85 = vsel %vm84, %v73, %v72
  %v86 = vsel %vm33, %v85, 0
  %88 = vmatpush.msra.mxu0 0.0
  %89 = vmatpush.msra.mxu0 0.0
  %90 = vmatpush.msra.mxu0 0.0
  %91 = vmatpush.msra.mxu0 0.0
  %92 = vmatpush.msra.mxu0 0.0
  %93 = vmatpush.msra.mxu0 0.0
  %94 = vmatpush.msra.mxu0 0.0
  %95 = vmatpush.msra.mxu0 0.0
  %96 = vmatpush.msra.mxu0 0.0
  %97 = vmatpush.msra.mxu0 0.0
  %98 = vmatpush.msra.mxu0 0.0
  %99 = vmatpush.msra.mxu0 0.0
  %100 = vmatpush.msra.mxu0 %v77
  %101 = vmatpush.msra.mxu0 %v76
  %102 = vmatpush.msra.mxu0 %v75
  %103 = vmatpush.msra.mxu0 %v74
  %104 = vmatmul.f32.gmra.mxu0 %v86
  %v105 = vpop.f32.mrf.mxu0
  %v106 = vadd.f32 %v80, %v105
  %107 = vdwg.mxu0
  %v108 = vld [vmem:[%s4] sm:$0x1]
  %v109 = vadd.f32 %v108, 1e-05
  %v110 = vrsqrt.pop %v109
  %v111 = vmul.f32 %v110, %v109
  %v112 = vmul.f32 %v111, %v110
  %v113 = vmul.f32 0.5, %v112
  %v114 = vsub.f32 1.5, %v113
  %v115 = vmul.f32 %v110, %v114
  %vm116 = vweird.f32 %v109
  %vm117 = vweird.f32 %v110
  %vm118 = vmor %vm116, %vm117
  %v119 = vsel %vm118, %v110, %v115
  %v120 = vadd.f32 %v106, 1.0
  %v122 = vperm.slane %v119, 0
  %v124 = vmul.f32 %v122, %v120
  %vm125 = vcmask 254976
  %126 = vst.msk [vmem:[%s5] sm:$0x3] %vm125, %v124
  %v127 = vld [vmem:[%s3] sm:$0x1]
  %v129 = vperm.slane %v127, 0
  %v131 = vmul.f32 %v129, %v124
  %133 = vrot.lane.b32.xlu0 %v131, 32
  %v134 = vpop.permute.xlu0 %133
  %v136 = vsub.f32 %v106, %v134
  %138 = vrot.lane.b32.xlu0 %v136, 96
  %v139 = vpop.permute.xlu0 %138
  %141 = vst.msk [vmem:[%s6] sm:$0x3] %vm125, %v139
  %v142 = vmul.f32 %v72, %v72
  %v143 = vmul.f32 %v73, %v73
  %v146 = vsel %vm84, %v143, %v142
  %v148 = vsel %vm125, %v146, 0.0
  %149 = vadd.xlane.f32.xlu0 %v148
  %v150 = vpop.xlane.xlu0 %149
  %v151 = vrsqrt.pop %v150
  %v152 = vmul.f32 %v151, %v150
  %v153 = vmul.f32 %v152, %v151
  %v154 = vmul.f32 0.5, %v153
  %v155 = vsub.f32 1.5, %v154
  %v156 = vmul.f32 %v151, %v155
  %v157 = vmul.f32 %v150, %v156
  %vm158 = vcmp.eq.f32.partialorder %v150, inf
  %v159 = vsel %vm158, %v150, %v157
  %vm160 = vcmp.eq.f32.partialorder %v150, 0.0
  %v161 = vand.u32 %v150, 2147483648
  %v162 = vsel %vm160, %v161, %v159
  %v163 = vadd.f32 %v162, 1e-08
  %v165 = vrot.slane %v163, 1
  %v168 = vrcp.pop %v163
  %v169 = vmul.f32 %v163, %v168
  %v170 = vsub.f32 1.0, %v169
  %v171 = vmul.f32 %v168, %v170
  %v172 = vadd.f32 %v168, %v171
  %vm173 = vweird.f32 %v163
  %vm174 = vweird.f32 %v168
  %vm175 = vmor %vm173, %vm174
  %v176 = vsel %vm175, %v168, %v172
  %v177 = vand.u32 2147483647, %v163
  %vm178 = vcmp.eq.f32.partialorder %v177, 8.507059e+37
  %v179 = vand.u32 %v163, 2147483648
  %v180 = vor.u32 1.1754944e-38, %v179
  %v181 = vsel %vm178, %v180, %v176
  %v182 = vmul.f32 %v72, %v181
  %v183 = vrcp.pop %v165
  %v184 = vmul.f32 %v165, %v183
  %v185 = vsub.f32 1.0, %v184
  %v186 = vmul.f32 %v183, %v185
  %v187 = vadd.f32 %v183, %v186
  %vm188 = vweird.f32 %v165
  %vm189 = vweird.f32 %v183
  %vm190 = vmor %vm188, %vm189
  %v191 = vsel %vm190, %v183, %v187
  %v192 = vand.u32 2147483647, %v165
  %vm193 = vcmp.eq.f32.partialorder %v192, 8.507059e+37
  %v194 = vand.u32 %v165, 2147483648
  %v195 = vor.u32 1.1754944e-38, %v194
  %v196 = vsel %vm193, %v195, %v191
  %v197 = vmul.f32 %v73, %v196
  %v200 = vrot.slane %v197, 7
  %v201 = vsel %vm84, %v200, %v182
  %203 = vst.msk [vmem:[%s7] sm:$0x3] %vm125, %v201
  // Predicated region
  $region22: #{adaptive_embedding_i2t.2} parent=0 // pred_check
    _
  $region23: #{adaptive_embedding_i2t.2} parent=0 // pred_check_branch
    %205 = sbr.rel (0) target = $region25
  $region24: #{adaptive_embedding_i2t.2} parent=0 // pred_region
    _
  $region25: #{adaptive_embedding_i2t.2} parent=0 // pred_fallthru
    _
  // Predicated region
  $region26: #{adaptive_embedding_i2t.2} parent=0 // pred_check
    _
  $region27: #{adaptive_embedding_i2t.2} parent=0 // pred_check_branch
    %207 = sbr.rel (0) target = $region29
  $region28: #{adaptive_embedding_i2t.2} parent=0 // pred_region
    _
  $region29: #{adaptive_embedding_i2t.2} parent=0 // pred_fallthru
    _
  // Predicated region
  $region30: #{adaptive_embedding_i2t.2} parent=0 // pred_check
    _
  $region31: #{adaptive_embedding_i2t.2} parent=0 // pred_check_branch
    %209 = sbr.rel (0) target = $region33
  $region32: #{adaptive_embedding_i2t.2} parent=0 // pred_region
    _
  $region33: #{adaptive_embedding_i2t.2} parent=0 // pred_fallthru
    _
  // Predicated region
  $region34: #{adaptive_embedding_i2t.2} parent=0 // pred_check
    _
  $region35: #{adaptive_embedding_i2t.2} parent=0 // pred_check_branch
    %211 = sbr.rel (0) target = $region37
  $region36: #{adaptive_embedding_i2t.2} parent=0 // pred_region
    _
  $region37: #{adaptive_embedding_i2t.2} parent=0 // pred_fallthru
    _
  // Predicated region
  $region38: #{adaptive_embedding_i2t.2} parent=0 // pred_check
    _
  $region39: #{adaptive_embedding_i2t.2} parent=0 // pred_check_branch
    %213 = sbr.rel (0) target = $region41
  $region40: #{adaptive_embedding_i2t.2} parent=0 // pred_region
    _
  $region41: #{adaptive_embedding_i2t.2} parent=0 // pred_fallthru
    _
  // Predicated region
  $region42: #{adaptive_embedding_i2t.2} parent=0 // pred_check
    _
  $region43: #{adaptive_embedding_i2t.2} parent=0 // pred_check_branch
    %215 = sbr.rel (0) target = $region45
  $region44: #{adaptive_embedding_i2t.2} parent=0 // pred_region
    _
  $region45: #{adaptive_embedding_i2t.2} parent=0 // pred_fallthru
    _

</llo_original>
